<compile_context>
chip_gen: v7x
topology: tpu7x:2x2x1
jax: 0.10.0
libtpu: 0.0.40
codegen_flags: <defaults>
</compile_context>

<pallas_src>
import jax
import jax.numpy as jnp
from jax.experimental import pallas as pl
from jax.experimental.pallas import tpu as pltpu

TM_DEFAULT = 256    # row tile (sublanes); clamped to the problem size
TN_DEFAULT = 1024   # vocab tile (lanes);  clamped to the problem size


def _round_up(x, m):
    return (x + m - 1) // m * m


def _tile_sizes(n_rows, vocab, tm, tn):
    tm_eff = min(tm, _round_up(n_rows, 8))
    tn_eff = min(tn, _round_up(vocab, 128))
    n_pad = _round_up(n_rows, tm_eff)
    v_pad = _round_up(vocab, tn_eff)
    return tm_eff, tn_eff, n_pad, v_pad


# ------------------ kernel 1: encoder + decoder -> logits --------------------
def _logits_kernel(lm_ref, ft_ref, w_lm_ref, w_ft_ref, b_ref, w_dec_ref,
                   out_ref, h_ref):
    # Encoder hidden state is computed once per row tile (j == 0), stored in
    # the decoder compute dtype, and reused across all vocab tiles.
    @pl.when(pl.program_id(1) == 0)
    def _():
        h = jnp.dot(lm_ref[...], w_lm_ref[...], preferred_element_type=jnp.float32)
        h = h + jnp.dot(ft_ref[...], w_ft_ref[...], preferred_element_type=jnp.float32)
        h_ref[...] = jnp.maximum(h + b_ref[...], 0.0).astype(h_ref.dtype)

    out_ref[...] = jnp.dot(h_ref[...], w_dec_ref[...],
                           preferred_element_type=jnp.float32).astype(out_ref.dtype)


def fused_logits(lm2d, ft2d, w_lm, w_ft, b_enc, w_dec, *, tm=TM_DEFAULT, tn=TN_DEFAULT):
    n, h_lm = lm2d.shape
    h_ft = ft2d.shape[1]
    h_enc = w_lm.shape[1]
    vocab = w_dec.shape[1]

    tm, tn, n_pad, v_pad = _tile_sizes(n, vocab, tm, tn)
    if n_pad != n:
        lm2d = jnp.pad(lm2d, ((0, n_pad - n), (0, 0)))
        ft2d = jnp.pad(ft2d, ((0, n_pad - n), (0, 0)))
    if v_pad != vocab:
        w_dec = jnp.pad(w_dec, ((0, 0), (0, v_pad - vocab)))

    out = pl.pallas_call(
        _logits_kernel,
        out_shape=jax.ShapeDtypeStruct((n_pad, v_pad), jnp.float32),
        grid_spec=pltpu.PrefetchScalarGridSpec(
            num_scalar_prefetch=0,
            grid=(n_pad // tm, v_pad // tn),
            in_specs=[
                pl.BlockSpec((tm, h_lm), lambda i, j: (i, 0)),
                pl.BlockSpec((tm, h_ft), lambda i, j: (i, 0)),
                pl.BlockSpec((h_lm, h_enc), lambda i, j: (0, 0)),
                pl.BlockSpec((h_ft, h_enc), lambda i, j: (0, 0)),
                pl.BlockSpec((1, h_enc), lambda i, j: (0, 0)),
                pl.BlockSpec((h_enc, tn), lambda i, j: (0, j)),   # vocab-tiled decoder weight
            ],
            out_specs=pl.BlockSpec((tm, tn), lambda i, j: (i, j)),
            scratch_shapes=[pltpu.VMEM((tm, h_enc), w_dec.dtype)],
        ),
        compiler_params=pltpu.CompilerParams(
            dimension_semantics=("parallel", "arbitrary")),
    )(lm2d, ft2d, w_lm, w_ft, b_enc, w_dec)
    return out, n, vocab


# -------- kernel 2: encoder + decoder + online log_softmax + NLL loss --------
def _make_loss_kernel(vocab, v_pad, tn):
    needs_mask = (v_pad != vocab)  # static

    def kernel(lm_ref, ft_ref, lab_ref, w_lm_ref, w_ft_ref, b_ref, w_dec_ref,
               nll_ref, cnt_ref, h_ref, m_ref, s_ref, pick_ref):
        j = pl.program_id(1)

        @pl.when(j == 0)
        def _():
            h = jnp.dot(lm_ref[...], w_lm_ref[...], preferred_element_type=jnp.float32)
            h = h + jnp.dot(ft_ref[...], w_ft_ref[...], preferred_element_type=jnp.float32)
            h_ref[...] = jnp.maximum(h + b_ref[...], 0.0).astype(h_ref.dtype)
            m_ref[...] = jnp.full_like(m_ref, -jnp.inf)
            s_ref[...] = jnp.zeros_like(s_ref)
            pick_ref[...] = jnp.zeros_like(pick_ref)

        # logits for this vocab tile; never written to HBM.
        logits = jnp.dot(h_ref[...], w_dec_ref[...],
                         preferred_element_type=jnp.float32)            # (TM, TN)

        # Work in tile-local column coordinates: avoids shifting a (TM, TN)
        # iota by j*tn on every tile.
        col_local = jax.lax.broadcasted_iota(jnp.int32, logits.shape, 1)
        if needs_mask:
            logits = jnp.where(col_local < (vocab - j * tn), logits, -1e30)

        labels = lab_ref[...]                                            # (TM, 1) int32
        lab_local = labels - j * tn
        # gather the label logit (label matches exactly one global column)
        pick_ref[...] += jnp.sum(jnp.where(col_local == lab_local, logits, 0.0),
                                 axis=-1, keepdims=True)

        # online softmax running (max, sum)
        m_prev = m_ref[...]
        m_new = jnp.maximum(m_prev, jnp.max(logits, axis=-1, keepdims=True))
        s_ref[...] = (s_ref[...] * jnp.exp(m_prev - m_new)
                      + jnp.sum(jnp.exp(logits - m_new), axis=-1, keepdims=True))
        m_ref[...] = m_new

        @pl.when(j == pl.num_programs(1) - 1)
        def _():
            lse = m_ref[...] + jnp.log(s_ref[...])
            mask = (labels != 0).astype(jnp.float32)                     # ignore_index=0
            nll_ref[...] = (lse - pick_ref[...]) * mask                  # -log p[label]
            cnt_ref[...] = mask

    return kernel


def fused_nll_loss(lm2d, ft2d, labels1d, w_lm, w_ft, b_enc, w_dec, *,
                   tm=TM_DEFAULT, tn=TN_DEFAULT):
    n, h_lm = lm2d.shape
    h_ft = ft2d.shape[1]
    h_enc = w_lm.shape[1]
    vocab = w_dec.shape[1]

    tm, tn, n_pad, v_pad = _tile_sizes(n, vocab, tm, tn)
    if n_pad != n:
        lm2d = jnp.pad(lm2d, ((0, n_pad - n), (0, 0)))
        ft2d = jnp.pad(ft2d, ((0, n_pad - n), (0, 0)))
        labels1d = jnp.pad(labels1d, (0, n_pad - n))      # label 0 == ignore_index
    if v_pad != vocab:
        w_dec = jnp.pad(w_dec, ((0, 0), (0, v_pad - vocab)))
    labels2d = labels1d.reshape(n_pad, 1).astype(jnp.int32)

    nll, cnt = pl.pallas_call(
        _make_loss_kernel(vocab, v_pad, tn),
        out_shape=(jax.ShapeDtypeStruct((n_pad, 1), jnp.float32),
                   jax.ShapeDtypeStruct((n_pad, 1), jnp.float32)),
        grid_spec=pltpu.PrefetchScalarGridSpec(
            num_scalar_prefetch=0,
            grid=(n_pad // tm, v_pad // tn),
            in_specs=[
                pl.BlockSpec((tm, h_lm), lambda i, j: (i, 0)),
                pl.BlockSpec((tm, h_ft), lambda i, j: (i, 0)),
                pl.BlockSpec((tm, 1), lambda i, j: (i, 0)),
                pl.BlockSpec((h_lm, h_enc), lambda i, j: (0, 0)),
                pl.BlockSpec((h_ft, h_enc), lambda i, j: (0, 0)),
                pl.BlockSpec((1, h_enc), lambda i, j: (0, 0)),
                pl.BlockSpec((h_enc, tn), lambda i, j: (0, j)),
            ],
            out_specs=[pl.BlockSpec((tm, 1), lambda i, j: (i, 0)),
                       pl.BlockSpec((tm, 1), lambda i, j: (i, 0))],
            scratch_shapes=[pltpu.VMEM((tm, h_enc), w_dec.dtype),   # encoder activations
                            pltpu.VMEM((tm, 1), jnp.float32),       # running max
                            pltpu.VMEM((tm, 1), jnp.float32),       # running sum
                            pltpu.VMEM((tm, 1), jnp.float32)],      # picked label logit
        ),
        compiler_params=pltpu.CompilerParams(
            dimension_semantics=("parallel", "arbitrary")),
    )(lm2d, ft2d, labels2d, w_lm, w_ft, b_enc, w_dec)

    # tiny per-row partials; final mean in plain JAX
    return jnp.sum(nll) / jnp.maximum(jnp.sum(cnt), 1.0)


# ---------------- FusionLM forward (glue in plain JAX) -----------------------
def fusion_lm_forward(params, lm_hidden_states, feature_hidden_states, lm_labels=None,
                      *, compute_dtype=jnp.float32, tm=TM_DEFAULT, tn=TN_DEFAULT):
    if feature_hidden_states.ndim < lm_hidden_states.ndim:
        B, T = lm_hidden_states.shape[:2]
        Hf = feature_hidden_states.shape[-1]
        feature_hidden_states = jnp.broadcast_to(
            feature_hidden_states[:, None, :], (B, T, Hf))

    B, T, H_lm = lm_hidden_states.shape
    H_ft = feature_hidden_states.shape[-1]
    w_enc = params["w_enc"]
    b_enc = params["b_enc"].reshape(1, -1).astype(jnp.float32)
    vocab = params["w_dec"].shape[1]

    # split of the (implicit) concat: fused @ W_enc == lm @ W_enc[:Hlm] + feat @ W_enc[Hlm:]
    w_lm = w_enc[:H_lm].astype(compute_dtype)
    w_ft = w_enc[H_lm:].astype(compute_dtype)
    w_dec = params["w_dec"].astype(compute_dtype)

    if lm_labels is not None:
        # shift happens BEFORE the kernel: only the needed B*(T-1) rows are computed
        lm2d = lm_hidden_states[:, :-1, :].reshape(-1, H_lm).astype(compute_dtype)
        ft2d = feature_hidden_states[:, :-1, :].reshape(-1, H_ft).astype(compute_dtype)
        labels = lm_labels[:, 1:].reshape(-1)
        return fused_nll_loss(lm2d, ft2d, labels, w_lm, w_ft, b_enc, w_dec, tm=tm, tn=tn)

    lm2d = lm_hidden_states.reshape(-1, H_lm).astype(compute_dtype)
    ft2d = feature_hidden_states.reshape(-1, H_ft).astype(compute_dtype)
    logits_pad, n, vocab = fused_logits(lm2d, ft2d, w_lm, w_ft, b_enc, w_dec, tm=tm, tn=tn)
    return logits_pad[:n, :vocab].reshape(B, T, vocab)


# ---------------- pure-JAX reference (for correctness check) -----------------
def _reference(params, lm_h, feat_h, labels):
    B, T, _ = lm_h.shape
    if feat_h.ndim < lm_h.ndim:
        feat_h = jnp.broadcast_to(feat_h[:, None, :], (B, T, feat_h.shape[-1]))
    fused = jnp.concatenate([lm_h, feat_h], axis=-1)
    h = jnp.maximum(fused @ params["w_enc"] + params["b_enc"].reshape(-1), 0.0)
    logits = h @ params["w_dec"]
    sl = logits[:, :-1, :].reshape(-1, logits.shape[-1])
    ll = labels[:, 1:].reshape(-1)
    logp = jax.nn.log_softmax(sl, axis=-1)
    picked = jnp.take_along_axis(logp, ll[:, None], axis=-1)[:, 0]
    mask = (ll != 0).astype(jnp.float32)
    loss = -jnp.sum(picked * mask) / jnp.maximum(jnp.sum(mask), 1.0)
    return logits, loss


def _make_case(key, B, T, H_LM, H_FEAT, H_ENC, VOCAB):
    k1, k2, k3, k4, k5, k6 = jax.random.split(key, 6)
    lm_hidden = jax.random.normal(k1, (B, T, H_LM), dtype=jnp.float32)
    feat_hidden = jax.random.normal(k2, (B, H_FEAT), dtype=jnp.float32)   # 2D -> expand path
    lm_labels = jax.random.randint(k3, (B, T), 0, VOCAB, dtype=jnp.int32)
    params = {
        "w_enc": jax.random.normal(k4, (H_LM + H_FEAT, H_ENC), dtype=jnp.float32) * 0.05,
        "b_enc": jax.random.normal(k5, (1, H_ENC), dtype=jnp.float32) * 0.05,
        "w_dec": jax.random.normal(k6, (H_ENC, VOCAB), dtype=jnp.float32) * 0.05,
    }
    return params, lm_hidden, feat_hidden, lm_labels


if __name__ == "__main__":
    key = jax.random.PRNGKey(0)
    k_a, k_b = jax.random.split(key)

    # Case A: small, single vocab tile, f32 (tight check)
    params, lm_h, ft_h, labels = _make_case(k_a, B=2, T=8, H_LM=32, H_FEAT=32,
                                            H_ENC=32, VOCAB=128)
    logits = jax.block_until_ready(fusion_lm_forward(params, lm_h, ft_h))
    loss = jax.block_until_ready(fusion_lm_forward(params, lm_h, ft_h, lm_labels=labels))
    ref_logits, ref_loss = _reference(params, lm_h, ft_h, labels)
    assert logits.shape == ref_logits.shape
    assert jnp.allclose(logits, ref_logits, rtol=1e-5, atol=1e-5)
    assert jnp.allclose(loss, ref_loss, rtol=1e-5, atol=1e-5)

    # Case B: ragged shapes -> row padding + multiple / padded vocab tiles (tn=128)
    params2, lm_h2, ft_h2, labels2 = _make_case(k_b, B=2, T=9, H_LM=32, H_FEAT=16,
                                                H_ENC=48, VOCAB=200)
    logits2 = jax.block_until_ready(fusion_lm_forward(params2, lm_h2, ft_h2, tn=128))
    loss2 = jax.block_until_ready(
        fusion_lm_forward(params2, lm_h2, ft_h2, lm_labels=labels2, tn=128))
    ref_logits2, ref_loss2 = _reference(params2, lm_h2, ft_h2, labels2)
    assert jnp.allclose(logits2, ref_logits2, rtol=1e-5, atol=1e-5)
    assert jnp.allclose(loss2, ref_loss2, rtol=1e-5, atol=1e-5)

    # Case C: bf16 compute path (f32 accumulation), loose check
    logits_bf = jax.block_until_ready(
        fusion_lm_forward(params, lm_h, ft_h, compute_dtype=jnp.bfloat16))
    loss_bf = jax.block_until_ready(
        fusion_lm_forward(params, lm_h, ft_h, lm_labels=labels, compute_dtype=jnp.bfloat16))
    assert bool(jnp.all(jnp.isfinite(logits_bf))) and bool(jnp.isfinite(loss_bf))
    assert jnp.allclose(logits_bf, ref_logits, rtol=5e-2, atol=5e-2)
    assert jnp.allclose(loss_bf, ref_loss, rtol=5e-2, atol=5e-2)

    print("KERNEL_OK")
</pallas_src>

<mosaic_0001>
module attributes {stable_mosaic.version = 11 : i64} {
  func.func @_logits_kernel(%arg0: i32, %arg1: i32, %arg2: memref<16x32xf32, #tpu.memory_space<vmem>>, %arg3: memref<16x32xf32, #tpu.memory_space<vmem>>, %arg4: memref<32x32xf32, #tpu.memory_space<vmem>>, %arg5: memref<32x32xf32, #tpu.memory_space<vmem>>, %arg6: memref<1x32xf32, #tpu.memory_space<vmem>>, %arg7: memref<32x128xf32, #tpu.memory_space<vmem>>, %arg8: memref<16x128xf32, #tpu.memory_space<vmem>>, %arg9: memref<16x32xf32, #tpu.memory_space<vmem>>) attributes {dimension_semantics = [#tpu.dimension_semantics<parallel>, #tpu.dimension_semantics<arbitrary>], iteration_bounds = array<i64: 1, 1>, scalar_prefetch = 0 : i64, scratch_operands = 1 : i64, tpu.core_type = #tpu.core_type<tc>, window_params = [{transform_indices = @transform_0, window_bounds = array<i64: 16, 32>}, {transform_indices = @transform_1, window_bounds = array<i64: 16, 32>}, {pipeline_mode = #tpu.pipeline_mode<synchronous>, transform_indices = @transform_2, window_bounds = array<i64: 32, 32>}, {pipeline_mode = #tpu.pipeline_mode<synchronous>, transform_indices = @transform_3, window_bounds = array<i64: 32, 32>}, {pipeline_mode = #tpu.pipeline_mode<synchronous>, transform_indices = @transform_4, window_bounds = array<i64: 1, 32>}, {transform_indices = @transform_5, window_bounds = array<i64: 32, 128>}, {transform_indices = @transform_6, window_bounds = array<i64: 16, 128>}]} {
    %c0_i32 = arith.constant 0 : i32
    %0 = arith.cmpi eq, %arg1, %c0_i32 : i32
    %1 = arith.extui %0 : i1 to i32
    %c0_i32_0 = arith.constant 0 : i32
    %2 = arith.cmpi ne, %1, %c0_i32_0 : i32
    scf.if %2 {
      %c0_6 = arith.constant 0 : index
      %c0_7 = arith.constant 0 : index
      %7 = vector.load %arg2[%c0_6, %c0_7] : memref<16x32xf32, #tpu.memory_space<vmem>>, vector<16x32xf32>
      %c0_8 = arith.constant 0 : index
      %c0_9 = arith.constant 0 : index
      %8 = vector.load %arg4[%c0_8, %c0_9] : memref<32x32xf32, #tpu.memory_space<vmem>>, vector<32x32xf32>
      %cst_10 = arith.constant dense<0.000000e+00> : vector<16x32xf32>
      %9 = tpu.matmul %7, %8, %cst_10 {dimension_numbers = #tpu.dot_dimension_numbers<[1], [0], [0], [1], [0, 0, 1, 1], [], []>} : vector<16x32xf32>, vector<32x32xf32>, vector<16x32xf32> -> vector<16x32xf32>
      %c0_11 = arith.constant 0 : index
      %c0_12 = arith.constant 0 : index
      %10 = vector.load %arg3[%c0_11, %c0_12] : memref<16x32xf32, #tpu.memory_space<vmem>>, vector<16x32xf32>
      %c0_13 = arith.constant 0 : index
      %c0_14 = arith.constant 0 : index
      %11 = vector.load %arg5[%c0_13, %c0_14] : memref<32x32xf32, #tpu.memory_space<vmem>>, vector<32x32xf32>
      %cst_15 = arith.constant dense<0.000000e+00> : vector<16x32xf32>
      %12 = tpu.matmul %10, %11, %cst_15 {dimension_numbers = #tpu.dot_dimension_numbers<[1], [0], [0], [1], [0, 0, 1, 1], [], []>} : vector<16x32xf32>, vector<32x32xf32>, vector<16x32xf32> -> vector<16x32xf32>
      %13 = arith.addf %9, %12 : vector<16x32xf32>
      %c0_16 = arith.constant 0 : index
      %c0_17 = arith.constant 0 : index
      %14 = vector.load %arg6[%c0_16, %c0_17] : memref<1x32xf32, #tpu.memory_space<vmem>>, vector<1x32xf32>
      %15 = vector.broadcast %14 : vector<1x32xf32> to vector<16x32xf32>
      %16 = arith.addf %13, %15 : vector<16x32xf32>
      %cst_18 = arith.constant 0.000000e+00 : f32
      %17 = vector.broadcast %cst_18 : f32 to vector<16x32xf32>
      %18 = arith.maximumf %16, %17 : vector<16x32xf32>
      %c0_19 = arith.constant 0 : index
      %c0_20 = arith.constant 0 : index
      %19 = vector.load %arg9[%c0_19, %c0_20] : memref<16x32xf32, #tpu.memory_space<vmem>>, vector<16x32xf32>
      tpu.vector_store %arg9[%c0_19, %c0_20], %18 {strides = array<i32>} : memref<16x32xf32, #tpu.memory_space<vmem>>, vector<16x32xf32>,
    } else {
    }
    %c0 = arith.constant 0 : index
    %c0_1 = arith.constant 0 : index
    %3 = vector.load %arg9[%c0, %c0_1] : memref<16x32xf32, #tpu.memory_space<vmem>>, vector<16x32xf32>
    %c0_2 = arith.constant 0 : index
    %c0_3 = arith.constant 0 : index
    %4 = vector.load %arg7[%c0_2, %c0_3] : memref<32x128xf32, #tpu.memory_space<vmem>>, vector<32x128xf32>
    %cst = arith.constant dense<0.000000e+00> : vector<16x128xf32>
    %5 = tpu.matmul %3, %4, %cst {dimension_numbers = #tpu.dot_dimension_numbers<[1], [0], [0], [1], [0, 0, 1, 1], [], []>} : vector<16x32xf32>, vector<32x128xf32>, vector<16x128xf32> -> vector<16x128xf32>
    %c0_4 = arith.constant 0 : index
    %c0_5 = arith.constant 0 : index
    %6 = vector.load %arg8[%c0_4, %c0_5] : memref<16x128xf32, #tpu.memory_space<vmem>>, vector<16x128xf32>
    tpu.vector_store %arg8[%c0_4, %c0_5], %5 {strides = array<i32>} : memref<16x128xf32, #tpu.memory_space<vmem>>, vector<16x128xf32>,
    return
  }
  func.func @transform_0(%arg0: i32, %arg1: i32) -> (i32, i32) {
    %c0_i32 = arith.constant 0 : i32
    %c0_i32_0 = arith.constant 0 : i32
    return %arg0, %c0_i32 : i32, i32
  }
  func.func @transform_1(%arg0: i32, %arg1: i32) -> (i32, i32) {
    %c0_i32 = arith.constant 0 : i32
    %c0_i32_0 = arith.constant 0 : i32
    return %arg0, %c0_i32 : i32, i32
  }
  func.func @transform_2(%arg0: i32, %arg1: i32) -> (i32, i32) {
    %c0_i32 = arith.constant 0 : i32
    %c0_i32_0 = arith.constant 0 : i32
    %c0_i32_1 = arith.constant 0 : i32
    return %c0_i32, %c0_i32_0 : i32, i32
  }
  func.func @transform_3(%arg0: i32, %arg1: i32) -> (i32, i32) {
    %c0_i32 = arith.constant 0 : i32
    %c0_i32_0 = arith.constant 0 : i32
    %c0_i32_1 = arith.constant 0 : i32
    return %c0_i32, %c0_i32_0 : i32, i32
  }
  func.func @transform_4(%arg0: i32, %arg1: i32) -> (i32, i32) {
    %c0_i32 = arith.constant 0 : i32
    %c0_i32_0 = arith.constant 0 : i32
    %c0_i32_1 = arith.constant 0 : i32
    return %c0_i32, %c0_i32_0 : i32, i32
  }
  func.func @transform_5(%arg0: i32, %arg1: i32) -> (i32, i32) {
    %c0_i32 = arith.constant 0 : i32
    %c0_i32_0 = arith.constant 0 : i32
    return %c0_i32, %arg1 : i32, i32
  }
  func.func @transform_6(%arg0: i32, %arg1: i32) -> (i32, i32) {
    %c0_i32 = arith.constant 0 : i32
    return %arg0, %arg1 : i32, i32
  }
}

</mosaic_0001>

<llo_original>
// kernel: tpu_custom_call.1
$region0: #{tpu_custom_call.1}
  #allocation0 [shape = 'u32[]', space=smem, size = 0x4, offset = 0x4, fixed_abs, tag = 'smem constant byte address 0x4 - core index']
  #allocation1 [shape = 'u32[144,128]{1,0:T(1,128)}', space=vmem, size = 0x12000, scoped, tag = 'internal scratch']
  #allocation2 [shape = 'f32[16,32]{1,0:T(8,128)}', space=vmem, size = 0x2000, scoped, tag = 'scratch operand']
  %s0 = inlined_call_operand.hbm [shape: f32[16,32], index: 0, kind: input, shape index: {}]
  %s1 = inlined_call_operand.hbm [shape: f32[16,32], index: 1, kind: input, shape index: {}]
  %s2 = inlined_call_operand.hbm [shape: f32[32,32], index: 2, kind: input, shape index: {}]
  %s3 = inlined_call_operand.hbm [shape: f32[32,32], index: 3, kind: input, shape index: {}]
  %s4 = inlined_call_operand.vmem [shape: f32[1,32], index: 4, kind: input, shape index: {}]
  %s5 = inlined_call_operand.hbm [shape: f32[32,128], index: 5, kind: input, shape index: {}]
  %s6 = inlined_call_operand.hbm [shape: f32[16,128], index: 6, kind: output, shape index: {}]
  %s7 = sld [smem:[#allocation0]]
  $region58: #{tpu_custom_call.1} parent=0
    _
  %s9 = ssub.s32 1, %s7
  %s10 = scalar_select 0, %s9, %s7
  $region1: #{tpu_custom_call.1} parent=0
    #allocation3 [shape = 'u8[8192]{0}', space=vmem, size = 0x2000, scoped, tag = 'input window, operand 0, single buffered']
    #allocation4 [shape = 's32[1]{0}', space=sflag, size = 0x4, scoped, tag = 'scoped memory for tpu_custom_call.1']
    #allocation5 [shape = 's32[1]{0}', space=sflag, size = 0x4, scoped, tag = 'scoped memory for tpu_custom_call.1']
    #allocation6 [shape = 'u8[8192]{0}', space=vmem, size = 0x2000, scoped, tag = 'input window, operand 1, single buffered']
    #allocation7 [shape = 's32[1]{0}', space=sflag, size = 0x4, scoped, tag = 'scoped memory for tpu_custom_call.1']
    #allocation8 [shape = 'u8[16384]{0}', space=vmem, size = 0x4000, scoped, tag = 'input window, operand 2, single buffered']
    #allocation9 [shape = 'u8[16384]{0}', space=vmem, size = 0x4000, scoped, tag = 'input window, operand 3, single buffered']
    #allocation10 [shape = 's32[1]{0}', space=sflag, size = 0x4, scoped, tag = 'scoped memory for tpu_custom_call.1']
    #allocation11 [shape = 'u8[16384]{0}', space=vmem, size = 0x4000, scoped, tag = 'input window, operand 5, single buffered']
    #allocation12 [shape = 'u8[8192]{0}', space=vmem, size = 0x2000, scoped, tag = 'output window, operand 0, single buffered']
    %11 = vsyncpa [#allocation4], 0
    %12 = vsyncpa [#allocation7], 0
    %13 = vsyncpa [#allocation10], 0
    %14 = vsyncpa [#allocation5], 0
    // Predicated region
    $region2: #{tpu_custom_call.1} parent=1 // pred_check
      _
    $region3: #{tpu_custom_call.1} parent=1 // pred_check_branch
      %16 = sbr.rel (0) target = $region5
    $region4: #{tpu_custom_call.1} parent=1 // pred_region
      %s18 = ssub.s32 256, 256
      %19 = vsyncadd [#allocation4], %s18
      %s20 = sshll.u32 [#allocation3], 4
      %s21 = int_to_ptr.vmem [resolvable:$true] %s20
      %26 = dma.hbm_to_vmem [thread:$0]  %s0, 256, %s21, [#allocation4], 128, 128, 8
    $region5: #{tpu_custom_call.1} parent=1 // pred_fallthru
      _
    // Predicated region
    $region6: #{tpu_custom_call.1} parent=1 // pred_check
      _
    $region7: #{tpu_custom_call.1} parent=1 // pred_check_branch
      %28 = sbr.rel (0) target = $region9
    $region8: #{tpu_custom_call.1} parent=1 // pred_region
      %s30 = ssub.s32 256, 256
      %31 = vsyncadd [#allocation7], %s30
      %s32 = sshll.u32 [#allocation6], 4
      %s33 = int_to_ptr.vmem [resolvable:$true] %s32
      %38 = dma.hbm_to_vmem [thread:$0]  %s1, 256, %s33, [#allocation7], 128, 128, 8
    $region9: #{tpu_custom_call.1} parent=1 // pred_fallthru
      _
    // Predicated region
    $region10: #{tpu_custom_call.1} parent=1 // pred_check
      _
    $region11: #{tpu_custom_call.1} parent=1 // pred_check_branch
      %40 = sbr.rel (0) target = $region13
    $region12: #{tpu_custom_call.1} parent=1 // pred_region
      %s42 = ssub.s32 512, 512
      %43 = vsyncadd [#allocation7], %s42
      %s44 = sshll.u32 [#allocation8], 4
      %s45 = int_to_ptr.vmem [resolvable:$true] %s44
      %50 = dma.hbm_to_vmem [thread:$0]  %s2, 512, %s45, [#allocation7], 128, 128, 8
    $region13: #{tpu_custom_call.1} parent=1 // pred_fallthru
      _
    // Predicated region
    $region14: #{tpu_custom_call.1} parent=1 // pred_check
      _
    $region15: #{tpu_custom_call.1} parent=1 // pred_check_branch
      %52 = sbr.rel (0) target = $region17
    $region16: #{tpu_custom_call.1} parent=1 // pred_region
      %s54 = ssub.s32 512, 512
      %55 = vsyncadd [#allocation10], %s54
      %s56 = sshll.u32 [#allocation9], 4
      %s57 = int_to_ptr.vmem [resolvable:$true] %s56
      %62 = dma.hbm_to_vmem [thread:$0]  %s3, 512, %s57, [#allocation10], 128, 128, 8
    $region17: #{tpu_custom_call.1} parent=1 // pred_fallthru
      _
    // Predicated region
    $region18: #{tpu_custom_call.1} parent=1 // pred_check
      _
    $region19: #{tpu_custom_call.1} parent=1 // pred_check_branch
      %64 = sbr.rel (0) target = $region21
    $region20: #{tpu_custom_call.1} parent=1 // pred_region
      _
    $region21: #{tpu_custom_call.1} parent=1 // pred_fallthru
      _
    // Predicated region
    $region22: #{tpu_custom_call.1} parent=1 // pred_check
      _
    $region23: #{tpu_custom_call.1} parent=1 // pred_check_branch
      %66 = sbr.rel (0) target = $region25
    $region24: #{tpu_custom_call.1} parent=1 // pred_region
      %s68 = ssub.s32 512, 512
      %69 = vsyncadd [#allocation10], %s68
      %s70 = sshll.u32 [#allocation11], 4
      %s71 = int_to_ptr.vmem [resolvable:$true] %s70
      %76 = dma.hbm_to_vmem [thread:$0]  %s5, 512, %s71, [#allocation10], 128, 128, 8
    $region25: #{tpu_custom_call.1} parent=1 // pred_fallthru
      _
    // Predicated region
    $region26: #{tpu_custom_call.1} parent=1 // pred_check
      _
    $region27: #{tpu_custom_call.1} parent=1 // pred_check_branch
      %78 = sbr.rel (0) target = $region29
    $region28: #{tpu_custom_call.1} parent=1 // pred_region
      %79 = dma.done [#allocation4], 256
    $region29: #{tpu_custom_call.1} parent=1 // pred_fallthru
      _
    // Predicated region
    $region30: #{tpu_custom_call.1} parent=1 // pred_check
      _
    $region31: #{tpu_custom_call.1} parent=1 // pred_check_branch
      %81 = sbr.rel (0) target = $region33
    $region32: #{tpu_custom_call.1} parent=1 // pred_region
      %82 = dma.done [#allocation7], 256
    $region33: #{tpu_custom_call.1} parent=1 // pred_fallthru
      _
    // Predicated region
    $region34: #{tpu_custom_call.1} parent=1 // pred_check
      _
    $region35: #{tpu_custom_call.1} parent=1 // pred_check_branch
      %84 = sbr.rel (0) target = $region37
    $region36: #{tpu_custom_call.1} parent=1 // pred_region
      %85 = dma.done [#allocation7], 512
    $region37: #{tpu_custom_call.1} parent=1 // pred_fallthru
      _
    // Predicated region
    $region38: #{tpu_custom_call.1} parent=1 // pred_check
      _
    $region39: #{tpu_custom_call.1} parent=1 // pred_check_branch
      %87 = sbr.rel (0) target = $region41
    $region40: #{tpu_custom_call.1} parent=1 // pred_region
      %88 = dma.done [#allocation10], 512
    $region41: #{tpu_custom_call.1} parent=1 // pred_fallthru
      _
    // Predicated region
    $region42: #{tpu_custom_call.1} parent=1 // pred_check
      _
    $region43: #{tpu_custom_call.1} parent=1 // pred_check_branch
      %90 = sbr.rel (0) target = $region45
    $region44: #{tpu_custom_call.1} parent=1 // pred_region
      %91 = dma.done [#allocation10], 512
    $region45: #{tpu_custom_call.1} parent=1 // pred_fallthru
      _
    %p92 = scmp.eq.s32.totalorder 0, 0
    // Predicated region
    $region46: #{tpu_custom_call.1} parent=1 // pred_check
      %p93 = pneg %p92
    $region47: #{tpu_custom_call.1} parent=1 // pred_check_branch
      %95 = sbr.rel (%p93) target = $region49
    $region48: #{tpu_custom_call.1} parent=1 // pred_region
      %v96 = vld [vmem:[#allocation3] sm:$0xff]
      %v97 = vld [vmem:[#allocation3 + $0x8] sm:$0xff]
      %v98 = vld [vmem:[#allocation8] sm:$0xff]
      %v99 = vld [vmem:[#allocation8 + $0x8] sm:$0xff]
      %v100 = vld [vmem:[#allocation8 + $0x10] sm:$0xff]
      %v101 = vld [vmem:[#allocation8 + $0x18] sm:$0xff]
      %v102 = vld [vmem:[#allocation6] sm:$0xff]
      %v103 = vld [vmem:[#allocation6 + $0x8] sm:$0xff]
      %v104 = vld [vmem:[#allocation9] sm:$0xff]
      %v105 = vld [vmem:[#allocation9 + $0x8] sm:$0xff]
      %v106 = vld [vmem:[#allocation9 + $0x10] sm:$0xff]
      %v107 = vld [vmem:[#allocation9 + $0x18] sm:$0xff]
      %vm108 = vcmask 261120
      %v110 = vsel %vm108, %v102, 0
      %v113 = vsel %vm108, %v103, 0
      %115 = vmatprep.subr.mxu0 0.0
      %116 = vmatpush1.msra.mxu0 %v104
      %117 = vmatprep.subr.mxu0 0.0
      %118 = vmatpush1.msra.mxu0 %v105
      %119 = vmatprep.subr.mxu0 0.0
      %120 = vmatpush1.msra.mxu0 %v106
      %121 = vmatprep.subr.mxu0 0.0
      %122 = vmatpush1.msra.mxu0 %v107
      %123 = vmatprep.subr.mxu0 0.0
      %124 = vmatpush1.msra.mxu0 0.0
      %125 = vmatprep.subr.mxu0 0.0
      %126 = vmatpush1.msra.mxu0 0.0
      %127 = vmatprep.subr.mxu0 0.0
      %128 = vmatpush1.msra.mxu0 0.0
      %129 = vmatprep.subr.mxu0 0.0
      %130 = vmatpush1.msra.mxu0 0.0
      %131 = vmatprep.subr.mxu0 0.0
      %132 = vmatpush1.msra.mxu0 0.0
      %133 = vmatprep.subr.mxu0 0.0
      %134 = vmatpush1.msra.mxu0 0.0
      %135 = vmatprep.subr.mxu0 0.0
      %136 = vmatpush1.msra.mxu0 0.0
      %137 = vmatprep.subr.mxu0 0.0
      %138 = vmatpush1.msra.mxu0 0.0
      %139 = vmatprep.subr.mxu0 0.0
      %140 = vmatpush1.msra.mxu0 0.0
      %141 = vmatprep.subr.mxu0 0.0
      %142 = vmatpush1.msra.mxu0 0.0
      %143 = vmatprep.subr.mxu0 0.0
      %144 = vmatpush1.msra.mxu0 0.0
      %145 = vmatprep.subr.mxu0 0.0
      %146 = vmatpush1.msra.mxu0 0.0
      %147 = vmatprep.subr.mxu0 0.0
      %148 = vmatpush1.msra.mxu0 0.0
      %149 = vmatprep.subr.mxu0 0.0
      %150 = vmatpush1.msra.mxu0 0.0
      %151 = vmatprep.subr.mxu0 0.0
      %152 = vmatpush1.msra.mxu0 0.0
      %153 = vmatprep.subr.mxu0 0.0
      %154 = vmatpush1.msra.mxu0 0.0
      %155 = vmatprep.subr.mxu0 0.0
      %156 = vmatpush1.msra.mxu0 0.0
      %157 = vmatprep.subr.mxu0 0.0
      %158 = vmatpush1.msra.mxu0 0.0
      %159 = vmatprep.subr.mxu0 0.0
      %160 = vmatpush1.msra.mxu0 0.0
      %161 = vmatprep.subr.mxu0 0.0
      %162 = vmatpush1.msra.mxu0 0.0
      %163 = vmatprep.subr.mxu0 0.0
      %164 = vmatpush1.msra.mxu0 0.0
      %165 = vmatprep.subr.mxu0 0.0
      %166 = vmatpush1.msra.mxu0 0.0
      %167 = vmatprep.subr.mxu0 0.0
      %168 = vmatpush1.msra.mxu0 0.0
      %169 = vmatprep.subr.mxu0 0.0
      %170 = vmatpush1.msra.mxu0 0.0
      %171 = vmatprep.subr.mxu0 0.0
      %172 = vmatpush1.msra.mxu0 0.0
      %173 = vmatprep.subr.mxu0 0.0
      %174 = vmatpush1.msra.mxu0 0.0
      %175 = vmatprep.subr.mxu0 0.0
      %176 = vmatpush1.msra.mxu0 0.0
      %177 = vmatprep.subr.mxu0 0.0
      %178 = vmatpush1.msra.mxu0 0.0
      %179 = vmatprep.mubr.f32.mxu0 0.0
      %180 = vmatmul.mubr.f32.gmra.mrb[0].mxu0 %v110
      %v181 = vpop.f32.mrb[0].mxu0
      %v182 = vadd.f32 0.0, %v181
      %v183 = vpop.f32.mrb[0].mxu0
      %184 = vmatprep.mubr.f32.mxu0 0.0
      %185 = vmatmul.mubr.f32.gmra.mrb[0].mxu0 %v113
      %v186 = vpop.f32.mrb[0].mxu0
      %v187 = vadd.f32 0.0, %v186
      %v188 = vpop.f32.mrb[0].mxu0
      %189 = vdwg.mxu0
      %v191 = vsel %vm108, %v96, 0
      %v194 = vsel %vm108, %v97, 0
      %196 = vmatprep.subr.mxu0 0.0
      %197 = vmatpush1.msra.mxu0 %v98
      %198 = vmatprep.subr.mxu0 0.0
      %199 = vmatpush1.msra.mxu0 %v99
      %200 = vmatprep.subr.mxu0 0.0
      %201 = vmatpush1.msra.mxu0 %v100
      %202 = vmatprep.subr.mxu0 0.0
      %203 = vmatpush1.msra.mxu0 %v101
      %204 = vmatprep.subr.mxu0 0.0
      %205 = vmatpush1.msra.mxu0 0.0
      %206 = vmatprep.subr.mxu0 0.0
      %207 = vmatpush1.msra.mxu0 0.0
      %208 = vmatprep.subr.mxu0 0.0
      %209 = vmatpush1.msra.mxu0 0.0
      %210 = vmatprep.subr.mxu0 0.0
      %211 = vmatpush1.msra.mxu0 0.0
      %212 = vmatprep.subr.mxu0 0.0
      %213 = vmatpush1.msra.mxu0 0.0
      %214 = vmatprep.subr.mxu0 0.0
      %215 = vmatpush1.msra.mxu0 0.0
      %216 = vmatprep.subr.mxu0 0.0
      %217 = vmatpush1.msra.mxu0 0.0
      %218 = vmatprep.subr.mxu0 0.0
      %219 = vmatpush1.msra.mxu0 0.0
      %220 = vmatprep.subr.mxu0 0.0
      %221 = vmatpush1.msra.mxu0 0.0
      %222 = vmatprep.subr.mxu0 0.0
      %223 = vmatpush1.msra.mxu0 0.0
      %224 = vmatprep.subr.mxu0 0.0
      %225 = vmatpush1.msra.mxu0 0.0
      %226 = vmatprep.subr.mxu0 0.0
      %227 = vmatpush1.msra.mxu0 0.0
      %228 = vmatprep.subr.mxu0 0.0
      %229 = vmatpush1.msra.mxu0 0.0
      %230 = vmatprep.subr.mxu0 0.0
      %231 = vmatpush1.msra.mxu0 0.0
      %232 = vmatprep.subr.mxu0 0.0
      %233 = vmatpush1.msra.mxu0 0.0
      %234 = vmatprep.subr.mxu0 0.0
      %235 = vmatpush1.msra.mxu0 0.0
      %236 = vmatprep.subr.mxu0 0.0
      %237 = vmatpush1.msra.mxu0 0.0
      %238 = vmatprep.subr.mxu0 0.0
      %239 = vmatpush1.msra.mxu0 0.0
      %240 = vmatprep.subr.mxu0 0.0
      %241 = vmatpush1.msra.mxu0 0.0
      %242 = vmatprep.subr.mxu0 0.0
      %243 = vmatpush1.msra.mxu0 0.0
      %244 = vmatprep.subr.mxu0 0.0
      %245 = vmatpush1.msra.mxu0 0.0
      %246 = vmatprep.subr.mxu0 0.0
      %247 = vmatpush1.msra.mxu0 0.0
      %248 = vmatprep.subr.mxu0 0.0
      %249 = vmatpush1.msra.mxu0 0.0
      %250 = vmatprep.subr.mxu0 0.0
      %251 = vmatpush1.msra.mxu0 0.0
      %252 = vmatprep.subr.mxu0 0.0
      %253 = vmatpush1.msra.mxu0 0.0
      %254 = vmatprep.subr.mxu0 0.0
      %255 = vmatpush1.msra.mxu0 0.0
      %256 = vmatprep.subr.mxu0 0.0
      %257 = vmatpush1.msra.mxu0 0.0
      %258 = vmatprep.subr.mxu0 0.0
      %259 = vmatpush1.msra.mxu0 0.0
      %260 = vmatprep.mubr.f32.mxu0 0.0
      %261 = vmatmul.mubr.f32.gmra.mrb[0].mxu0 %v191
      %v262 = vpop.f32.mrb[0].mxu0
      %v263 = vadd.f32 %v182, %v262
      %v264 = vpop.f32.mrb[0].mxu0
      %265 = vmatprep.mubr.f32.mxu0 0.0
      %266 = vmatmul.mubr.f32.gmra.mrb[0].mxu0 %v194
      %v267 = vpop.f32.mrb[0].mxu0
      %v268 = vadd.f32 %v187, %v267
      %v269 = vpop.f32.mrb[0].mxu0
      %270 = vdwg.mxu0
      %v271 = vld [vmem:[%s4] sm:$0x1]
      %v273 = vlaneseq
      %v274 = vshrl.u32 %v273, 7
      %v275 = vsub.s32 0, %v274
      %v276 = vrot.slane %v271, %v275
      %v278 = vadd.f32 %v263, %v276
      %v279 = vadd.f32 %v268, %v276
      %v280 = vmax.f32 %v278, 0.0
      %v281 = vmax.f32 %v279, 0.0
      %282 = vst.msk [vmem:[#allocation2] sm:$0xff] %vm108, %v280
      %283 = vst.msk [vmem:[#allocation2 + $0x8] sm:$0xff] %vm108, %v281
    $region49: #{tpu_custom_call.1} parent=1 // pred_fallthru
      _
    %v284 = vld [vmem:[#allocation2] sm:$0xff]
    %v285 = vld [vmem:[#allocation2 + $0x8] sm:$0xff]
    %v286 = vld [vmem:[#allocation11] sm:$0xff]
    %v287 = vld [vmem:[#allocation11 + $0x8] sm:$0xff]
    %v288 = vld [vmem:[#allocation11 + $0x10] sm:$0xff]
    %v289 = vld [vmem:[#allocation11 + $0x18] sm:$0xff]
    %vm290 = vcmask 261120
    %v292 = vsel %vm290, %v284, 0
    %v295 = vsel %vm290, %v285, 0
    %297 = vmatprep.subr.mxu0 0.0
    %298 = vmatpush1.msra.mxu0 %v286
    %299 = vmatprep.subr.mxu0 0.0
    %300 = vmatpush1.msra.mxu0 %v287
    %301 = vmatprep.subr.mxu0 0.0
    %302 = vmatpush1.msra.mxu0 %v288
    %303 = vmatprep.subr.mxu0 0.0
    %304 = vmatpush1.msra.mxu0 %v289
    %305 = vmatprep.subr.mxu0 0.0
    %306 = vmatpush1.msra.mxu0 0.0
    %307 = vmatprep.subr.mxu0 0.0
    %308 = vmatpush1.msra.mxu0 0.0
    %309 = vmatprep.subr.mxu0 0.0
    %310 = vmatpush1.msra.mxu0 0.0
    %311 = vmatprep.subr.mxu0 0.0
    %312 = vmatpush1.msra.mxu0 0.0
    %313 = vmatprep.subr.mxu0 0.0
    %314 = vmatpush1.msra.mxu0 0.0
    %315 = vmatprep.subr.mxu0 0.0
    %316 = vmatpush1.msra.mxu0 0.0
    %317 = vmatprep.subr.mxu0 0.0
    %318 = vmatpush1.msra.mxu0 0.0
    %319 = vmatprep.subr.mxu0 0.0
    %320 = vmatpush1.msra.mxu0 0.0
    %321 = vmatprep.subr.mxu0 0.0
    %322 = vmatpush1.msra.mxu0 0.0
    %323 = vmatprep.subr.mxu0 0.0
    %324 = vmatpush1.msra.mxu0 0.0
    %325 = vmatprep.subr.mxu0 0.0
    %326 = vmatpush1.msra.mxu0 0.0
    %327 = vmatprep.subr.mxu0 0.0
    %328 = vmatpush1.msra.mxu0 0.0
    %329 = vmatprep.subr.mxu0 0.0
    %330 = vmatpush1.msra.mxu0 0.0
    %331 = vmatprep.subr.mxu0 0.0
    %332 = vmatpush1.msra.mxu0 0.0
    %333 = vmatprep.subr.mxu0 0.0
    %334 = vmatpush1.msra.mxu0 0.0
    %335 = vmatprep.subr.mxu0 0.0
    %336 = vmatpush1.msra.mxu0 0.0
    %337 = vmatprep.subr.mxu0 0.0
    %338 = vmatpush1.msra.mxu0 0.0
    %339 = vmatprep.subr.mxu0 0.0
    %340 = vmatpush1.msra.mxu0 0.0
    %341 = vmatprep.subr.mxu0 0.0
    %342 = vmatpush1.msra.mxu0 0.0
    %343 = vmatprep.subr.mxu0 0.0
    %344 = vmatpush1.msra.mxu0 0.0
    %345 = vmatprep.subr.mxu0 0.0
    %346 = vmatpush1.msra.mxu0 0.0
    %347 = vmatprep.subr.mxu0 0.0
    %348 = vmatpush1.msra.mxu0 0.0
    %349 = vmatprep.subr.mxu0 0.0
    %350 = vmatpush1.msra.mxu0 0.0
    %351 = vmatprep.subr.mxu0 0.0
    %352 = vmatpush1.msra.mxu0 0.0
    %353 = vmatprep.subr.mxu0 0.0
    %354 = vmatpush1.msra.mxu0 0.0
    %355 = vmatprep.subr.mxu0 0.0
    %356 = vmatpush1.msra.mxu0 0.0
    %357 = vmatprep.subr.mxu0 0.0
    %358 = vmatpush1.msra.mxu0 0.0
    %359 = vmatprep.subr.mxu0 0.0
    %360 = vmatpush1.msra.mxu0 0.0
    %361 = vmatprep.mubr.f32.mxu0 0.0
    %362 = vmatmul.mubr.f32.gmra.mrb[0].mxu0 %v292
    %v363 = vpop.f32.mrb[0].mxu0
    %v364 = vadd.f32 0.0, %v363
    %v365 = vpop.f32.mrb[0].mxu0
    %366 = vmatprep.mubr.f32.mxu0 0.0
    %367 = vmatmul.mubr.f32.gmra.mrb[0].mxu0 %v295
    %v368 = vpop.f32.mrb[0].mxu0
    %v369 = vadd.f32 0.0, %v368
    %v370 = vpop.f32.mrb[0].mxu0
    %371 = vdwg.mxu0
    %372 = vst [vmem:[#allocation12] sm:$0xff] %v364
    %373 = vst [vmem:[#allocation12 + $0x8] sm:$0xff] %v369
    // Predicated region
    $region50: #{tpu_custom_call.1} parent=1 // pred_check
      _
    $region51: #{tpu_custom_call.1} parent=1 // pred_check_branch
      %375 = sbr.rel (0) target = $region53
    $region52: #{tpu_custom_call.1} parent=1 // pred_region
      %s377 = ssub.s32 256, 256
      %378 = vsyncadd [#allocation5], %s377
      %s379 = sshll.u32 [#allocation12], 4
      %s380 = int_to_ptr.vmem [resolvable:$true] %s379
      %385 = dma.vmem_to_hbm [thread:$0]  %s380, 256, %s6, [#allocation5], 128, 128, 8
    $region53: #{tpu_custom_call.1} parent=1 // pred_fallthru
      _
    // Predicated region
    $region54: #{tpu_custom_call.1} parent=1 // pred_check
      _
    $region55: #{tpu_custom_call.1} parent=1 // pred_check_branch
      %387 = sbr.rel (0) target = $region57
    $region56: #{tpu_custom_call.1} parent=1 // pred_region
      %388 = dma.done [#allocation5], 256
    $region57: #{tpu_custom_call.1} parent=1 // pred_fallthru
      _
    %389 = vsyncpa [#allocation4], 1
    %390 = vsyncpa [#allocation7], 1
    %391 = vsyncpa [#allocation10], 1
    %392 = vsyncpa [#allocation5], 1

</llo_original>
